<compile_context>
chip_gen: v6e
topology: v6e:2x2x1
jax: 0.10.0
libtpu: 0.0.40
codegen_flags: <defaults>
</compile_context>

<pallas_src>
import functools
import math

import jax
import jax.numpy as jnp
from jax.experimental import pallas as pl
from jax.experimental.pallas import tpu as pltpu


def _round_up(n, m):
    return ((n + m - 1) // m) * m


def _mlp_kernel(x_ref, w1_ref, b1_ref, w2_ref, b2_ref, w3_ref, b3_ref, o_ref,
                *, bf16_epilogue):
    """One batch tile of sigmoid(relu(relu(x@W1+b1)@W2+b2) . w3 + b3)."""
    # x arrives as raw f32 from HBM (no wrapper pad/cast pass); cast to bf16 on
    # the fly right before the MXU.
    xb = x_ref[...].astype(jnp.bfloat16)
    if bf16_epilogue:
        # v6e / v7x: pop the fc1 result as bf16, run bias+ReLU on the bf16 VALU
        # (2 rows per vreg) and feed fc2 directly -- the separate cast is gone.
        h1 = jnp.dot(xb, w1_ref[...], preferred_element_type=jnp.bfloat16)
        h1 = jnp.maximum(h1 + b1_ref[...], 0.0)          # stays bf16
    else:
        # v5e (no bf16 VALU): keep the fc1 epilogue in f32, cast once for fc2.
        h1 = jnp.dot(xb, w1_ref[...], preferred_element_type=jnp.float32)
        h1 = jnp.maximum(h1 + b1_ref[...], 0.0).astype(jnp.bfloat16)
    # fc2: bf16 MXU matmul, f32 accumulate; 128-wide epilogue stays f32.
    h2 = jnp.dot(h1, w2_ref[...], preferred_element_type=jnp.float32)
    h2 = jnp.maximum(h2 + b2_ref[...], 0.0)
    # fc3 (out_features == 1): VPU multiply + lane reduction instead of an
    # N=1 MXU matmul (which would use 1/256 of the MXU output lanes).
    logits = jnp.sum(h2 * w3_ref[...], axis=-1) + b3_ref[0]       # (tile_b,)
    # Lane-dense store: one (1, 1, tile_b) row per grid step.
    o_ref[...] = jax.nn.sigmoid(logits).reshape(o_ref.shape)


def net_forward(x, params, *, tile_b_max=2048):
    """Forward pass of Net as a Pallas TPU kernel. Returns shape (B,)."""
    # TODO(synk): torch `.squeeze()` returns a 0-d scalar when B == 1; this
    # wrapper always returns shape (B,).
    w1, b1, w2, b2, w3, b3 = params
    B, d_in = x.shape
    assert w1.shape[0] == d_in
    h1_dim = w1.shape[1]        # 512
    h2_dim = w2.shape[1]        # 128

    # --- tiling -------------------------------------------------------------
    # Small B (latency path): a single tile padded only to the bf16 sublane
    # pack (16).  Large B (throughput path): big tiles (cap tile_b_max) so the
    # ~0.35us per-grid-step overhead is amortised, with an EVEN tile count so
    # v7x's second TensorCore gets work through the "parallel" grid axis.
    if B <= 1024:
        tile_b = _round_up(B, 16)
        n_tiles = 1
    else:
        n_tiles = 2 * pl.cdiv(B, 2 * tile_b_max)          # even, >= 2
        tile_b = _round_up(pl.cdiv(B, n_tiles), 128)       # lane-dense output
    b_pad = n_tiles * tile_b

    # x stays f32 and unpadded along features (96 == full dim is a legal block
    # size); the only wrapper-side copy is batch padding, and only when needed.
    x_p = x if b_pad == B else jnp.pad(x, ((0, b_pad - B), (0, 0)))

    # fc1-epilogue dtype: bf16 on v6e/v7x (bf16 VALU), f32 on v5e and older.
    try:
        dk = jax.devices()[0].device_kind.lower()
    except Exception:  # pragma: no cover
        dk = ""
    bf16_epilogue = ("v6" in dk) or ("v7" in dk) or ("7x" in dk)

    w1_p = w1.astype(jnp.bfloat16)
    w2_p = w2.astype(jnp.bfloat16)
    b1_p = b1.reshape(1, h1_dim).astype(
        jnp.bfloat16 if bf16_epilogue else jnp.float32)
    b2_p = b2.reshape(1, h2_dim).astype(jnp.float32)
    w3_p = w3.reshape(1, h2_dim).astype(jnp.float32)    # fc3 weight as a row
    b3_p = b3.reshape(1).astype(jnp.float32)            # scalar bias -> SMEM

    if n_tiles >= 3:
        # Cheap insurance on v5e/v6e: a third x buffer hides DMA-issue jitter.
        x_spec = pl.BlockSpec((tile_b, d_in), lambda i: (i, 0),
                              pipeline_mode=pl.Buffered(3))
    else:
        x_spec = pl.BlockSpec((tile_b, d_in), lambda i: (i, 0))

    flops = 2 * b_pad * (d_in * h1_dim + h1_dim * h2_dim + h2_dim)
    bytes_accessed = (x_p.size * 4
                      + (w1_p.size + w2_p.size) * 2
                      + b1_p.size * b1_p.dtype.itemsize
                      + (b2_p.size + w3_p.size + b3_p.size) * 4
                      + b_pad * 4)

    out = pl.pallas_call(
        functools.partial(_mlp_kernel, bf16_epilogue=bf16_epilogue),
        out_shape=jax.ShapeDtypeStruct((n_tiles, 1, tile_b), jnp.float32),
        grid=(n_tiles,),
        in_specs=[
            x_spec,                                              # x: tiled on M
            pl.BlockSpec((d_in, h1_dim), lambda i: (0, 0)),      # W1 resident
            pl.BlockSpec((1, h1_dim), lambda i: (0, 0)),         # b1
            pl.BlockSpec((h1_dim, h2_dim), lambda i: (0, 0)),    # W2 resident
            pl.BlockSpec((1, h2_dim), lambda i: (0, 0)),         # b2
            pl.BlockSpec((1, h2_dim), lambda i: (0, 0)),         # w3 row
            pl.BlockSpec(memory_space=pltpu.MemorySpace.SMEM),   # b3 scalar
        ],
        out_specs=pl.BlockSpec((1, 1, tile_b), lambda i: (i, 0, 0)),
        compiler_params=pltpu.CompilerParams(
            dimension_semantics=("parallel",),    # megacore / v7x dual-TC split
        ),
        cost_estimate=pl.CostEstimate(
            flops=flops, transcendentals=b_pad, bytes_accessed=bytes_accessed),
    )(x_p, w1_p, b1_p, w2_p, b2_p, w3_p, b3_p)

    # (n_tiles, 1, tile_b) -> (B,): drop batch padding; matches torch .squeeze().
    return out.reshape(b_pad)[:B]


def init_params(key, embedding_dim):
    """PyTorch-default (uniform +/- 1/sqrt(fan_in)) Linear init.

    fc1/fc2 weights are stored as (in_features, out_features), i.e. the
    transpose of torch.nn.Linear.weight, so the kernel computes y = x @ W + b.
    The fc3 weight is kept as a (1, 128) row for the in-kernel VPU reduction.
    """
    dims = [(embedding_dim * 3, 512), (512, 128), (128, 1)]
    params = []
    for li, (fan_in, fan_out) in enumerate(dims):
        key, kw, kb = jax.random.split(key, 3)
        bound = 1.0 / math.sqrt(fan_in)
        if li < 2:
            w = jax.random.uniform(kw, (fan_in, fan_out), jnp.float32, -bound, bound)
            b = jax.random.uniform(kb, (1, fan_out), jnp.float32, -bound, bound)
        else:  # fc3: keep as a (1, fan_in) row + scalar bias
            w = jax.random.uniform(kw, (1, fan_in), jnp.float32, -bound, bound)
            b = jax.random.uniform(kb, (1,), jnp.float32, -bound, bound)
        params.extend([w, b])
    return tuple(params)


if __name__ == "__main__":
    embedding_dim = 32          # Net input features = 3 * 32 = 96
    batch = 8

    key = jax.random.PRNGKey(0)
    key, kx = jax.random.split(key)
    x = jax.random.normal(kx, (batch, embedding_dim * 3), dtype=jnp.float32)
    params = init_params(key, embedding_dim)

    y = net_forward(x, params)
    jax.block_until_ready(y)
    assert y.shape == (batch,), y.shape
    assert bool(jnp.all(jnp.isfinite(y)))
    assert bool(jnp.all((y >= 0.0) & (y <= 1.0)))

    # Cross-check against a plain-JAX f32 reference (bf16 matmul tolerance).
    w1, b1, w2, b2, w3, b3 = params
    h1 = jnp.maximum(x @ w1 + b1, 0.0)
    h2 = jnp.maximum(h1 @ w2 + b2, 0.0)
    ref = jax.nn.sigmoid(h2 @ w3.T + b3).reshape(-1)
    err = float(jnp.max(jnp.abs(y - ref)))
    assert err < 5e-2, err

    print("KERNEL_OK")
</pallas_src>

<mosaic_0001>
module attributes {stable_mosaic.version = 11 : i64} {
  func.func @_mlp_kernel(%arg0: i32, %arg1: memref<16x96xf32, #tpu.memory_space<vmem>>, %arg2: memref<96x512xbf16, #tpu.memory_space<vmem>>, %arg3: memref<1x512xf32, #tpu.memory_space<vmem>>, %arg4: memref<512x128xbf16, #tpu.memory_space<vmem>>, %arg5: memref<1x128xf32, #tpu.memory_space<vmem>>, %arg6: memref<1x128xf32, #tpu.memory_space<vmem>>, %arg7: memref<1xf32, #tpu.memory_space<smem>>, %arg8: memref<1x1x16xf32, #tpu.memory_space<vmem>>) attributes {dimension_semantics = [#tpu.dimension_semantics<parallel>], iteration_bounds = array<i64: 1>, scalar_prefetch = 0 : i64, scratch_operands = 0 : i64, tpu.core_type = #tpu.core_type<tc>, window_params = [{transform_indices = @transform_0, window_bounds = array<i64: 16, 96>}, {pipeline_mode = #tpu.pipeline_mode<synchronous>, transform_indices = @transform_1, window_bounds = array<i64: 96, 512>}, {pipeline_mode = #tpu.pipeline_mode<synchronous>, transform_indices = @transform_2, window_bounds = array<i64: 1, 512>}, {pipeline_mode = #tpu.pipeline_mode<synchronous>, transform_indices = @transform_3, window_bounds = array<i64: 512, 128>}, {pipeline_mode = #tpu.pipeline_mode<synchronous>, transform_indices = @transform_4, window_bounds = array<i64: 1, 128>}, {pipeline_mode = #tpu.pipeline_mode<synchronous>, transform_indices = @transform_5, window_bounds = array<i64: 1, 128>}, {transform_indices = @transform_6, window_bounds = array<i64: 1>}, {transform_indices = @transform_7, window_bounds = array<i64: 1, 1, 16>}]} {
    %c0 = arith.constant 0 : index
    %c0_0 = arith.constant 0 : index
    %0 = vector.load %arg1[%c0, %c0_0] : memref<16x96xf32, #tpu.memory_space<vmem>>, vector<16x96xf32>
    %1 = arith.truncf %0 : vector<16x96xf32> to vector<16x96xbf16>
    %c0_1 = arith.constant 0 : index
    %c0_2 = arith.constant 0 : index
    %2 = vector.load %arg2[%c0_1, %c0_2] : memref<96x512xbf16, #tpu.memory_space<vmem>>, vector<96x512xbf16>
    %cst = arith.constant dense<0.000000e+00> : vector<16x512xf32>
    %3 = tpu.matmul %1, %2, %cst {dimension_numbers = #tpu.dot_dimension_numbers<[1], [0], [0], [1], [0, 0, 1, 1], [], []>} : vector<16x96xbf16>, vector<96x512xbf16>, vector<16x512xf32> -> vector<16x512xf32>
    %c0_3 = arith.constant 0 : index
    %c0_4 = arith.constant 0 : index
    %4 = vector.load %arg3[%c0_3, %c0_4] : memref<1x512xf32, #tpu.memory_space<vmem>>, vector<1x512xf32>
    %5 = vector.broadcast %4 : vector<1x512xf32> to vector<16x512xf32>
    %6 = arith.addf %3, %5 : vector<16x512xf32>
    %cst_5 = arith.constant 0.000000e+00 : f32
    %7 = vector.broadcast %cst_5 : f32 to vector<16x512xf32>
    %8 = arith.maximumf %6, %7 : vector<16x512xf32>
    %9 = arith.truncf %8 : vector<16x512xf32> to vector<16x512xbf16>
    %c0_6 = arith.constant 0 : index
    %c0_7 = arith.constant 0 : index
    %10 = vector.load %arg4[%c0_6, %c0_7] : memref<512x128xbf16, #tpu.memory_space<vmem>>, vector<512x128xbf16>
    %cst_8 = arith.constant dense<0.000000e+00> : vector<16x128xf32>
    %11 = tpu.matmul %9, %10, %cst_8 {dimension_numbers = #tpu.dot_dimension_numbers<[1], [0], [0], [1], [0, 0, 1, 1], [], []>} : vector<16x512xbf16>, vector<512x128xbf16>, vector<16x128xf32> -> vector<16x128xf32>
    %c0_9 = arith.constant 0 : index
    %c0_10 = arith.constant 0 : index
    %12 = vector.load %arg5[%c0_9, %c0_10] : memref<1x128xf32, #tpu.memory_space<vmem>>, vector<1x128xf32>
    %13 = vector.broadcast %12 : vector<1x128xf32> to vector<16x128xf32>
    %14 = arith.addf %11, %13 : vector<16x128xf32>
    %cst_11 = arith.constant 0.000000e+00 : f32
    %15 = vector.broadcast %cst_11 : f32 to vector<16x128xf32>
    %16 = arith.maximumf %14, %15 : vector<16x128xf32>
    %c0_12 = arith.constant 0 : index
    %c0_13 = arith.constant 0 : index
    %17 = vector.load %arg6[%c0_12, %c0_13] : memref<1x128xf32, #tpu.memory_space<vmem>>, vector<1x128xf32>
    %18 = vector.broadcast %17 : vector<1x128xf32> to vector<16x128xf32>
    %19 = arith.mulf %16, %18 : vector<16x128xf32>
    %cst_14 = arith.constant dense<0.000000e+00> : vector<16xf32>
    %20 = vector.multi_reduction <add>, %19, %cst_14 [1] : vector<16x128xf32> to vector<16xf32>
    %c0_15 = arith.constant 0 : index
    %21 = memref.load %arg7[%c0_15] : memref<1xf32, #tpu.memory_space<smem>>
    %22 = vector.broadcast %21 : f32 to vector<16xf32>
    %23 = arith.addf %20, %22 : vector<16xf32>
    %24 = arith.negf %23 : vector<16xf32>
    %25 = math.exp %24 : vector<16xf32>
    %cst_16 = arith.constant 1.000000e+00 : f32
    %26 = vector.broadcast %cst_16 : f32 to vector<16xf32>
    %27 = arith.addf %26, %25 : vector<16xf32>
    %28 = arith.divf %26, %27 : vector<16xf32>
    %29 = vector.shape_cast %28 : vector<16xf32> to vector<1x1x16xf32>
    %c0_17 = arith.constant 0 : index
    %c0_18 = arith.constant 0 : index
    %c0_19 = arith.constant 0 : index
    %30 = vector.load %arg8[%c0_17, %c0_18, %c0_19] : memref<1x1x16xf32, #tpu.memory_space<vmem>>, vector<1x1x16xf32>
    tpu.vector_store %arg8[%c0_17, %c0_18, %c0_19], %29 {strides = array<i32>} : memref<1x1x16xf32, #tpu.memory_space<vmem>>, vector<1x1x16xf32>,
    return
  }
  func.func @transform_0(%arg0: i32) -> (i32, i32) {
    %c0_i32 = arith.constant 0 : i32
    %c0_i32_0 = arith.constant 0 : i32
    return %arg0, %c0_i32 : i32, i32
  }
  func.func @transform_1(%arg0: i32) -> (i32, i32) {
    %c0_i32 = arith.constant 0 : i32
    %c0_i32_0 = arith.constant 0 : i32
    %c0_i32_1 = arith.constant 0 : i32
    return %c0_i32, %c0_i32_0 : i32, i32
  }
  func.func @transform_2(%arg0: i32) -> (i32, i32) {
    %c0_i32 = arith.constant 0 : i32
    %c0_i32_0 = arith.constant 0 : i32
    %c0_i32_1 = arith.constant 0 : i32
    return %c0_i32, %c0_i32_0 : i32, i32
  }
  func.func @transform_3(%arg0: i32) -> (i32, i32) {
    %c0_i32 = arith.constant 0 : i32
    %c0_i32_0 = arith.constant 0 : i32
    %c0_i32_1 = arith.constant 0 : i32
    return %c0_i32, %c0_i32_0 : i32, i32
  }
  func.func @transform_4(%arg0: i32) -> (i32, i32) {
    %c0_i32 = arith.constant 0 : i32
    %c0_i32_0 = arith.constant 0 : i32
    %c0_i32_1 = arith.constant 0 : i32
    return %c0_i32, %c0_i32_0 : i32, i32
  }
  func.func @transform_5(%arg0: i32) -> (i32, i32) {
    %c0_i32 = arith.constant 0 : i32
    %c0_i32_0 = arith.constant 0 : i32
    %c0_i32_1 = arith.constant 0 : i32
    return %c0_i32, %c0_i32_0 : i32, i32
  }
  func.func @transform_6(%arg0: i32) -> i32 {
    %c0_i32 = arith.constant 0 : i32
    %c0_i32_0 = arith.constant 0 : i32
    return %c0_i32 : i32
  }
  func.func @transform_7(%arg0: i32) -> (i32, i32, i32) {
    %c0_i32 = arith.constant 0 : i32
    %c0_i32_0 = arith.constant 0 : i32
    %c0_i32_1 = arith.constant 0 : i32
    return %arg0, %c0_i32, %c0_i32_0 : i32, i32, i32
  }
}

</mosaic_0001>

<llo_original>
// kernel: tpu_custom_call.1
$region0: #{tpu_custom_call.1}
  #allocation0 [shape = 'u32[]', space=smem, size = 0x4, offset = 0x4, fixed_abs, tag = 'smem constant byte address 0x4 - core index']
  #allocation1 [shape = 'u32[144,128]{1,0:T(1,128)}', space=vmem, size = 0x12000, scoped, tag = 'internal scratch']
  #allocation2 [shape = 'f32[1]{0:T(128)S(6)}', space=smem, size = 0x200, scoped, tag = 'scoped memory for tpu_custom_call.1']
  %s0 = inlined_call_operand.hbm [shape: f32[16,96], index: 0, kind: input, shape index: {}]
  %s1 = inlined_call_operand.hbm [shape: bf16[96,512], index: 1, kind: input, shape index: {}]
  %s2 = inlined_call_operand.vmem [shape: f32[1,512], index: 2, kind: input, shape index: {}]
  %s3 = inlined_call_operand.hbm [shape: bf16[512,128], index: 3, kind: input, shape index: {}]
  %s4 = inlined_call_operand.vmem [shape: f32[1,128], index: 4, kind: input, shape index: {}]
  %s5 = inlined_call_operand.vmem [shape: f32[1,128], index: 5, kind: input, shape index: {}]
  %s6 = inlined_call_operand.<no memory space> [shape: f32[1], index: 6, kind: input, shape index: {}]
  %s7 = inlined_call_operand.hbm [shape: f32[1,1,16], index: 7, kind: output, shape index: {}]
  %s8 = sld [smem:[#allocation0]]
  $region50: #{tpu_custom_call.1} parent=0
    _
  %s10 = ssub.s32 1, %s8
  %s11 = scalar_select 0, %s10, %s8
  %12 = sst [smem:[#allocation2]] %s6
  $region1: #{tpu_custom_call.1} parent=0
    #allocation3 [shape = 'u8[8192]{0}', space=vmem, size = 0x2000, scoped, tag = 'input window, operand 0, single buffered']
    #allocation4 [shape = 's32[1]{0}', space=sflag, size = 0x4, scoped, tag = 'scoped memory for tpu_custom_call.1']
    #allocation5 [shape = 's32[1]{0}', space=sflag, size = 0x4, scoped, tag = 'scoped memory for tpu_custom_call.1']
    #allocation6 [shape = 'u8[98304]{0}', space=vmem, size = 0x18000, scoped, tag = 'input window, operand 1, single buffered']
    #allocation7 [shape = 's32[1]{0}', space=sflag, size = 0x4, scoped, tag = 'scoped memory for tpu_custom_call.1']
    #allocation8 [shape = 'u8[131072]{0}', space=vmem, size = 0x20000, scoped, tag = 'input window, operand 3, single buffered']
    #allocation9 [shape = 'u8[512]{0}', space=vmem, size = 0x400, scoped, tag = 'output window, operand 0, single buffered']
    %13 = vsyncpa [#allocation4], 0
    %14 = vsyncpa [#allocation7], 0
    %15 = vsyncpa [#allocation5], 0
    // Predicated region
    $region2: #{tpu_custom_call.1} parent=1 // pred_check
      _
    $region3: #{tpu_custom_call.1} parent=1 // pred_check_branch
      %17 = sbr.rel (0) target = $region5
    $region4: #{tpu_custom_call.1} parent=1 // pred_region
      %s19 = ssub.s32 256, 256
      %20 = vsyncadd [#allocation4], %s19
      %s21 = sshll.u32 [#allocation3], 4
      %s22 = int_to_ptr.vmem [resolvable:$true] %s21
      %27 = dma.hbm_to_vmem [thread:$0]  %s0, 256, %s22, [#allocation4], 128, 128, 8
    $region5: #{tpu_custom_call.1} parent=1 // pred_fallthru
      _
    // Predicated region
    $region6: #{tpu_custom_call.1} parent=1 // pred_check
      _
    $region7: #{tpu_custom_call.1} parent=1 // pred_check_branch
      %29 = sbr.rel (0) target = $region9
    $region8: #{tpu_custom_call.1} parent=1 // pred_region
      %s31 = ssub.s32 3072, 3072
      %32 = vsyncadd [#allocation7], %s31
      %s33 = sshll.u32 [#allocation6], 4
      %s34 = int_to_ptr.vmem [resolvable:$true] %s33
      %39 = dma.hbm_to_vmem [thread:$0]  %s1, 3072, %s34, [#allocation7], 256, 256, 16
    $region9: #{tpu_custom_call.1} parent=1 // pred_fallthru
      _
    // Predicated region
    $region10: #{tpu_custom_call.1} parent=1 // pred_check
      _
    $region11: #{tpu_custom_call.1} parent=1 // pred_check_branch
      %41 = sbr.rel (0) target = $region13
    $region12: #{tpu_custom_call.1} parent=1 // pred_region
      _
    $region13: #{tpu_custom_call.1} parent=1 // pred_fallthru
      _
    // Predicated region
    $region14: #{tpu_custom_call.1} parent=1 // pred_check
      _
    $region15: #{tpu_custom_call.1} parent=1 // pred_check_branch
      %43 = sbr.rel (0) target = $region17
    $region16: #{tpu_custom_call.1} parent=1 // pred_region
      %s45 = ssub.s32 4096, 4096
      %46 = vsyncadd [#allocation7], %s45
      %s47 = sshll.u32 [#allocation8], 4
      %s48 = int_to_ptr.vmem [resolvable:$true] %s47
      %53 = dma.hbm_to_vmem [thread:$0]  %s3, 4096, %s48, [#allocation7], 64, 64, 4
    $region17: #{tpu_custom_call.1} parent=1 // pred_fallthru
      _
    // Predicated region
    $region18: #{tpu_custom_call.1} parent=1 // pred_check
      _
    $region19: #{tpu_custom_call.1} parent=1 // pred_check_branch
      %55 = sbr.rel (0) target = $region21
    $region20: #{tpu_custom_call.1} parent=1 // pred_region
      _
    $region21: #{tpu_custom_call.1} parent=1 // pred_fallthru
      _
    // Predicated region
    $region22: #{tpu_custom_call.1} parent=1 // pred_check
      _
    $region23: #{tpu_custom_call.1} parent=1 // pred_check_branch
      %57 = sbr.rel (0) target = $region25
    $region24: #{tpu_custom_call.1} parent=1 // pred_region
      _
    $region25: #{tpu_custom_call.1} parent=1 // pred_fallthru
      _
    // Predicated region
    $region26: #{tpu_custom_call.1} parent=1 // pred_check
      _
    $region27: #{tpu_custom_call.1} parent=1 // pred_check_branch
      %59 = sbr.rel (0) target = $region29
    $region28: #{tpu_custom_call.1} parent=1 // pred_region
      _
    $region29: #{tpu_custom_call.1} parent=1 // pred_fallthru
      _
    // Predicated region
    $region30: #{tpu_custom_call.1} parent=1 // pred_check
      _
    $region31: #{tpu_custom_call.1} parent=1 // pred_check_branch
      %61 = sbr.rel (0) target = $region33
    $region32: #{tpu_custom_call.1} parent=1 // pred_region
      %62 = dma.done [#allocation4], 256
    $region33: #{tpu_custom_call.1} parent=1 // pred_fallthru
      _
    // Predicated region
    $region34: #{tpu_custom_call.1} parent=1 // pred_check
      _
    $region35: #{tpu_custom_call.1} parent=1 // pred_check_branch
      %64 = sbr.rel (0) target = $region37
    $region36: #{tpu_custom_call.1} parent=1 // pred_region
      %65 = dma.done [#allocation7], 3072
    $region37: #{tpu_custom_call.1} parent=1 // pred_fallthru
      _
    // Predicated region
    $region38: #{tpu_custom_call.1} parent=1 // pred_check
      _
    $region39: #{tpu_custom_call.1} parent=1 // pred_check_branch
      %67 = sbr.rel (0) target = $region41
    $region40: #{tpu_custom_call.1} parent=1 // pred_region
      %68 = dma.done [#allocation7], 4096
    $region41: #{tpu_custom_call.1} parent=1 // pred_fallthru
      _
    %v70 = vld [vmem:[#allocation3] sm:$0xff]
    %v71 = vld [vmem:[#allocation3 + $0x8] sm:$0xff]
    %v72 = vpack.c.bf16 %v71, %v70
    %v73 = vld [vmem:[#allocation6] sm:$0xff]
    %v74 = vld [vmem:[#allocation6 + $0x8] sm:$0xff]
    %v75 = vld [vmem:[#allocation6 + $0x10] sm:$0xff]
    %v76 = vld [vmem:[#allocation6 + $0x18] sm:$0xff]
    %v77 = vld [vmem:[#allocation6 + $0x20] sm:$0xff]
    %v78 = vld [vmem:[#allocation6 + $0x28] sm:$0xff]
    %v79 = vld [vmem:[#allocation6 + $0x30] sm:$0xff]
    %v80 = vld [vmem:[#allocation6 + $0x38] sm:$0xff]
    %v81 = vld [vmem:[#allocation6 + $0x40] sm:$0xff]
    %v82 = vld [vmem:[#allocation6 + $0x48] sm:$0xff]
    %v83 = vld [vmem:[#allocation6 + $0x50] sm:$0xff]
    %v84 = vld [vmem:[#allocation6 + $0x58] sm:$0xff]
    %v85 = vld [vmem:[#allocation6 + $0x60] sm:$0xff]
    %v86 = vld [vmem:[#allocation6 + $0x68] sm:$0xff]
    %v87 = vld [vmem:[#allocation6 + $0x70] sm:$0xff]
    %v88 = vld [vmem:[#allocation6 + $0x78] sm:$0xff]
    %v89 = vld [vmem:[#allocation6 + $0x80] sm:$0xff]
    %v90 = vld [vmem:[#allocation6 + $0x88] sm:$0xff]
    %v91 = vld [vmem:[#allocation6 + $0x90] sm:$0xff]
    %v92 = vld [vmem:[#allocation6 + $0x98] sm:$0xff]
    %v93 = vld [vmem:[#allocation6 + $0xa0] sm:$0xff]
    %v94 = vld [vmem:[#allocation6 + $0xa8] sm:$0xff]
    %v95 = vld [vmem:[#allocation6 + $0xb0] sm:$0xff]
    %v96 = vld [vmem:[#allocation6 + $0xb8] sm:$0xff]
    %v97 = vld [vmem:[%s2] sm:$0xf]
    %v99 = vlaneseq
    %v100 = vshrl.u32 %v99, 7
    %v101 = vsub.s32 0, %v100
    %v102 = vrot.slane %v97, %v101
    %v103 = vlaneseq
    %v104 = vshrl.u32 %v103, 7
    %v105 = vsub.s32 1, %v104
    %v106 = vrot.slane %v97, %v105
    %v107 = vlaneseq
    %v108 = vshrl.u32 %v107, 7
    %v109 = vsub.s32 2, %v108
    %v110 = vrot.slane %v97, %v109
    %v111 = vlaneseq
    %v112 = vshrl.u32 %v111, 7
    %v113 = vsub.s32 3, %v112
    %v114 = vrot.slane %v97, %v113
    %v143 = vunpack.c.l.b16 %v73
    %v144 = vunpack.c.h.b16 %v73
    %v145 = vunpack.c.l.b16 %v74
    %v146 = vunpack.c.h.b16 %v74
    %v147 = vunpack.c.l.b16 %v75
    %v148 = vunpack.c.h.b16 %v75
    %v149 = vunpack.c.l.b16 %v76
    %v150 = vunpack.c.h.b16 %v76
    %v151 = vunpack.c.l.b16 %v77
    %v152 = vunpack.c.h.b16 %v77
    %v153 = vunpack.c.l.b16 %v78
    %v154 = vunpack.c.h.b16 %v78
    %v155 = vunpack.c.l.b16 %v79
    %v156 = vunpack.c.h.b16 %v79
    %v157 = vunpack.c.l.b16 %v80
    %v158 = vunpack.c.h.b16 %v80
    %v159 = vunpack.c.l.b16 %v81
    %v160 = vunpack.c.h.b16 %v81
    %v161 = vunpack.c.l.b16 %v82
    %v162 = vunpack.c.h.b16 %v82
    %v163 = vunpack.c.l.b16 %v83
    %v164 = vunpack.c.h.b16 %v83
    %v165 = vunpack.c.l.b16 %v84
    %v166 = vunpack.c.h.b16 %v84
    %v167 = vunpack.c.l.b16 %v85
    %v168 = vunpack.c.h.b16 %v85
    %v169 = vunpack.c.l.b16 %v86
    %v170 = vunpack.c.h.b16 %v86
    %v171 = vunpack.c.l.b16 %v87
    %v172 = vunpack.c.h.b16 %v87
    %v173 = vunpack.c.l.b16 %v88
    %v174 = vunpack.c.h.b16 %v88
    %v175 = vunpack.c.l.b16 %v89
    %v176 = vunpack.c.h.b16 %v89
    %v177 = vunpack.c.l.b16 %v90
    %v178 = vunpack.c.h.b16 %v90
    %v179 = vunpack.c.l.b16 %v91
    %v180 = vunpack.c.h.b16 %v91
    %v181 = vunpack.c.l.b16 %v92
    %v182 = vunpack.c.h.b16 %v92
    %v183 = vunpack.c.l.b16 %v93
    %v184 = vunpack.c.h.b16 %v93
    %v185 = vunpack.c.l.b16 %v94
    %v186 = vunpack.c.h.b16 %v94
    %v187 = vunpack.c.l.b16 %v95
    %v188 = vunpack.c.h.b16 %v95
    %v189 = vunpack.c.l.b16 %v96
    %v190 = vunpack.c.h.b16 %v96
    %v191 = vpack.c.b16 %v147, %v143
    %v192 = vpack.c.b16 %v148, %v144
    %v193 = vpack.c.b16 %v149, %v145
    %v194 = vpack.c.b16 %v150, %v146
    %v195 = vpack.c.b16 %v155, %v151
    %v196 = vpack.c.b16 %v156, %v152
    %v197 = vpack.c.b16 %v157, %v153
    %v198 = vpack.c.b16 %v158, %v154
    %v199 = vpack.c.b16 %v163, %v159
    %v200 = vpack.c.b16 %v164, %v160
    %v201 = vpack.c.b16 %v165, %v161
    %v202 = vpack.c.b16 %v166, %v162
    %v203 = vpack.c.b16 %v171, %v167
    %v204 = vpack.c.b16 %v172, %v168
    %v205 = vpack.c.b16 %v173, %v169
    %v206 = vpack.c.b16 %v174, %v170
    %v207 = vpack.c.b16 %v179, %v175
    %v208 = vpack.c.b16 %v180, %v176
    %v209 = vpack.c.b16 %v181, %v177
    %v210 = vpack.c.b16 %v182, %v178
    %v211 = vpack.c.b16 %v187, %v183
    %v212 = vpack.c.b16 %v188, %v184
    %v213 = vpack.c.b16 %v189, %v185
    %v214 = vpack.c.b16 %v190, %v186
    %vm239 = vcmask 785408
    %v241 = vsel %vm239, %v72, 0
    %243 = vmatprep.subr.bf16.mxu0 0
    %244 = vmatpush1.bf16.msra.mxu0 0
    %245 = vmatprep.subr.bf16.mxu0 0
    %246 = vmatpush1.bf16.msra.mxu0 0
    %247 = vmatprep.subr.bf16.mxu0 %v212
    %248 = vmatpush1.bf16.msra.mxu0 %v211
    %249 = vmatprep.subr.bf16.mxu0 %v208
    %250 = vmatpush1.bf16.msra.mxu0 %v207
    %251 = vmatprep.subr.bf16.mxu0 %v204
    %252 = vmatpush1.bf16.msra.mxu0 %v203
    %253 = vmatprep.subr.bf16.mxu0 %v200
    %254 = vmatpush1.bf16.msra.mxu0 %v199
    %255 = vmatprep.subr.bf16.mxu0 %v196
    %256 = vmatpush1.bf16.msra.mxu0 %v195
    %257 = vmatprep.subr.bf16.mxu0 %v192
    %258 = vmatpush1.bf16.msra.mxu0 %v191
    %259 = vmatprep.subr.bf16.mxu0 0
    %260 = vmatpush2.bf16.msra.mxu0 0
    %261 = vmatprep.subr.bf16.mxu0 0
    %262 = vmatpush2.bf16.msra.mxu0 0
    %263 = vmatprep.subr.bf16.mxu0 0
    %264 = vmatpush2.bf16.msra.mxu0 0
    %265 = vmatprep.subr.bf16.mxu0 0
    %266 = vmatpush2.bf16.msra.mxu0 0
    %267 = vmatprep.subr.bf16.mxu0 0
    %268 = vmatpush2.bf16.msra.mxu0 0
    %269 = vmatprep.subr.bf16.mxu0 0
    %270 = vmatpush2.bf16.msra.mxu0 0
    %271 = vmatprep.subr.bf16.mxu0 0
    %272 = vmatpush2.bf16.msra.mxu0 0
    %273 = vmatprep.subr.bf16.mxu0 0
    %274 = vmatpush2.bf16.msra.mxu0 0
    %275 = vmatprep.mubr.bf16.mxu0 0
    %276 = vmatmul.mubr.bf16.gmra.mxu0 %v241
    %v277 = vpop.f32.mrf.mxu0
    %v278 = vadd.f32 %v102, %v277
    %v279 = vpop.f32.mrf.mxu0
    %v280 = vadd.f32 %v106, %v279
    %v281 = vpop.f32.mrf.mxu0
    %v282 = vadd.f32 %v102, %v281
    %v283 = vpop.f32.mrf.mxu0
    %v284 = vadd.f32 %v106, %v283
    %285 = vdwg.mxu0
    %286 = vmatprep.subr.bf16.mxu0 0
    %287 = vmatpush1.bf16.msra.mxu0 0
    %288 = vmatprep.subr.bf16.mxu0 0
    %289 = vmatpush1.bf16.msra.mxu0 0
    %290 = vmatprep.subr.bf16.mxu0 %v214
    %291 = vmatpush1.bf16.msra.mxu0 %v213
    %292 = vmatprep.subr.bf16.mxu0 %v210
    %293 = vmatpush1.bf16.msra.mxu0 %v209
    %294 = vmatprep.subr.bf16.mxu0 %v206
    %295 = vmatpush1.bf16.msra.mxu0 %v205
    %296 = vmatprep.subr.bf16.mxu0 %v202
    %297 = vmatpush1.bf16.msra.mxu0 %v201
    %298 = vmatprep.subr.bf16.mxu0 %v198
    %299 = vmatpush1.bf16.msra.mxu0 %v197
    %300 = vmatprep.subr.bf16.mxu0 %v194
    %301 = vmatpush1.bf16.msra.mxu0 %v193
    %302 = vmatprep.subr.bf16.mxu0 0
    %303 = vmatpush2.bf16.msra.mxu0 0
    %304 = vmatprep.subr.bf16.mxu0 0
    %305 = vmatpush2.bf16.msra.mxu0 0
    %306 = vmatprep.subr.bf16.mxu0 0
    %307 = vmatpush2.bf16.msra.mxu0 0
    %308 = vmatprep.subr.bf16.mxu0 0
    %309 = vmatpush2.bf16.msra.mxu0 0
    %310 = vmatprep.subr.bf16.mxu0 0
    %311 = vmatpush2.bf16.msra.mxu0 0
    %312 = vmatprep.subr.bf16.mxu0 0
    %313 = vmatpush2.bf16.msra.mxu0 0
    %314 = vmatprep.subr.bf16.mxu0 0
    %315 = vmatpush2.bf16.msra.mxu0 0
    %316 = vmatprep.subr.bf16.mxu0 0
    %317 = vmatpush2.bf16.msra.mxu0 0
    %318 = vmatprep.mubr.bf16.mxu0 0
    %319 = vmatmul.mubr.bf16.gmra.mxu0 %v241
    %v320 = vpop.f32.mrf.mxu0
    %v321 = vadd.f32 %v110, %v320
    %v322 = vpop.f32.mrf.mxu0
    %v323 = vadd.f32 %v114, %v322
    %v324 = vpop.f32.mrf.mxu0
    %v325 = vadd.f32 %v110, %v324
    %v326 = vpop.f32.mrf.mxu0
    %v327 = vadd.f32 %v114, %v326
    %328 = vdwg.mxu0
    %v329 = vmax.f32 %v278, 0.0
    %v330 = vmax.f32 %v280, 0.0
    %v331 = vmax.f32 %v321, 0.0
    %v332 = vmax.f32 %v323, 0.0
    %v333 = vmax.f32 %v282, 0.0
    %v334 = vmax.f32 %v284, 0.0
    %v335 = vmax.f32 %v325, 0.0
    %v336 = vmax.f32 %v327, 0.0
    %v337 = vpack.c.bf16 %v333, %v329
    %v338 = vpack.c.bf16 %v334, %v330
    %v339 = vpack.c.bf16 %v335, %v331
    %v340 = vpack.c.bf16 %v336, %v332
    %v341 = vld [vmem:[#allocation8] sm:$0xf]
    %v342 = vld [vmem:[#allocation8 + $0x4] sm:$0xf]
    %v343 = vld [vmem:[#allocation8 + $0x8] sm:$0xf]
    %v344 = vld [vmem:[#allocation8 + $0xc] sm:$0xf]
    %v345 = vld [vmem:[#allocation8 + $0x10] sm:$0xf]
    %v346 = vld [vmem:[#allocation8 + $0x14] sm:$0xf]
    %v347 = vld [vmem:[#allocation8 + $0x18] sm:$0xf]
    %v348 = vld [vmem:[#allocation8 + $0x1c] sm:$0xf]
    %v349 = vld [vmem:[#allocation8 + $0x20] sm:$0xf]
    %v350 = vld [vmem:[#allocation8 + $0x24] sm:$0xf]
    %v351 = vld [vmem:[#allocation8 + $0x28] sm:$0xf]
    %v352 = vld [vmem:[#allocation8 + $0x2c] sm:$0xf]
    %v353 = vld [vmem:[#allocation8 + $0x30] sm:$0xf]
    %v354 = vld [vmem:[#allocation8 + $0x34] sm:$0xf]
    %v355 = vld [vmem:[#allocation8 + $0x38] sm:$0xf]
    %v356 = vld [vmem:[#allocation8 + $0x3c] sm:$0xf]
    %v357 = vld [vmem:[#allocation8 + $0x40] sm:$0xf]
    %v358 = vld [vmem:[#allocation8 + $0x44] sm:$0xf]
    %v359 = vld [vmem:[#allocation8 + $0x48] sm:$0xf]
    %v360 = vld [vmem:[#allocation8 + $0x4c] sm:$0xf]
    %v361 = vld [vmem:[#allocation8 + $0x50] sm:$0xf]
    %v362 = vld [vmem:[#allocation8 + $0x54] sm:$0xf]
    %v363 = vld [vmem:[#allocation8 + $0x58] sm:$0xf]
    %v364 = vld [vmem:[#allocation8 + $0x5c] sm:$0xf]
    %v365 = vld [vmem:[#allocation8 + $0x60] sm:$0xf]
    %v366 = vld [vmem:[#allocation8 + $0x64] sm:$0xf]
    %v367 = vld [vmem:[#allocation8 + $0x68] sm:$0xf]
    %v368 = vld [vmem:[#allocation8 + $0x6c] sm:$0xf]
    %v369 = vld [vmem:[#allocation8 + $0x70] sm:$0xf]
    %v370 = vld [vmem:[#allocation8 + $0x74] sm:$0xf]
    %v371 = vld [vmem:[#allocation8 + $0x78] sm:$0xf]
    %v372 = vld [vmem:[#allocation8 + $0x7c] sm:$0xf]
    %v373 = vld [vmem:[#allocation8 + $0x80] sm:$0xf]
    %v374 = vld [vmem:[#allocation8 + $0x84] sm:$0xf]
    %v375 = vld [vmem:[#allocation8 + $0x88] sm:$0xf]
    %v376 = vld [vmem:[#allocation8 + $0x8c] sm:$0xf]
    %v377 = vld [vmem:[#allocation8 + $0x90] sm:$0xf]
    %v378 = vld [vmem:[#allocation8 + $0x94] sm:$0xf]
    %v379 = vld [vmem:[#allocation8 + $0x98] sm:$0xf]
    %v380 = vld [vmem:[#allocation8 + $0x9c] sm:$0xf]
    %v381 = vld [vmem:[#allocation8 + $0xa0] sm:$0xf]
    %v382 = vld [vmem:[#allocation8 + $0xa4] sm:$0xf]
    %v383 = vld [vmem:[#allocation8 + $0xa8] sm:$0xf]
    %v384 = vld [vmem:[#allocation8 + $0xac] sm:$0xf]
    %v385 = vld [vmem:[#allocation8 + $0xb0] sm:$0xf]
    %v386 = vld [vmem:[#allocation8 + $0xb4] sm:$0xf]
    %v387 = vld [vmem:[#allocation8 + $0xb8] sm:$0xf]
    %v388 = vld [vmem:[#allocation8 + $0xbc] sm:$0xf]
    %v389 = vld [vmem:[#allocation8 + $0xc0] sm:$0xf]
    %v390 = vld [vmem:[#allocation8 + $0xc4] sm:$0xf]
    %v391 = vld [vmem:[#allocation8 + $0xc8] sm:$0xf]
    %v392 = vld [vmem:[#allocation8 + $0xcc] sm:$0xf]
    %v393 = vld [vmem:[#allocation8 + $0xd0] sm:$0xf]
    %v394 = vld [vmem:[#allocation8 + $0xd4] sm:$0xf]
    %v395 = vld [vmem:[#allocation8 + $0xd8] sm:$0xf]
    %v396 = vld [vmem:[#allocation8 + $0xdc] sm:$0xf]
    %v397 = vld [vmem:[#allocation8 + $0xe0] sm:$0xf]
    %v398 = vld [vmem:[#allocation8 + $0xe4] sm:$0xf]
    %v399 = vld [vmem:[#allocation8 + $0xe8] sm:$0xf]
    %v400 = vld [vmem:[#allocation8 + $0xec] sm:$0xf]
    %v401 = vld [vmem:[#allocation8 + $0xf0] sm:$0xf]
    %v402 = vld [vmem:[#allocation8 + $0xf4] sm:$0xf]
    %v403 = vld [vmem:[#allocation8 + $0xf8] sm:$0xf]
    %v404 = vld [vmem:[#allocation8 + $0xfc] sm:$0xf]
    %v405 = vld [vmem:[%s4] sm:$0x1]
    %v407 = vlaneseq
    %v408 = vshrl.u32 %v407, 7
    %v409 = vsub.s32 0, %v408
    %v410 = vrot.slane %v405, %v409
    %v476 = vunpack.c.l.b16 %v341
    %v477 = vunpack.c.l.b16 %v342
    %v478 = vunpack.c.l.b16 %v343
    %v479 = vunpack.c.l.b16 %v344
    %v480 = vunpack.c.l.b16 %v345
    %v481 = vunpack.c.l.b16 %v346
    %v482 = vunpack.c.l.b16 %v347
    %v483 = vunpack.c.l.b16 %v348
    %v484 = vunpack.c.l.b16 %v349
    %v485 = vunpack.c.l.b16 %v350
    %v486 = vunpack.c.l.b16 %v351
    %v487 = vunpack.c.l.b16 %v352
    %v488 = vunpack.c.l.b16 %v353
    %v489 = vunpack.c.l.b16 %v354
    %v490 = vunpack.c.l.b16 %v355
    %v491 = vunpack.c.l.b16 %v356
    %v492 = vunpack.c.l.b16 %v357
    %v493 = vunpack.c.l.b16 %v358
    %v494 = vunpack.c.l.b16 %v359
    %v495 = vunpack.c.l.b16 %v360
    %v496 = vunpack.c.l.b16 %v361
    %v497 = vunpack.c.l.b16 %v362
    %v498 = vunpack.c.l.b16 %v363
    %v499 = vunpack.c.l.b16 %v364
    %v500 = vunpack.c.l.b16 %v365
    %v501 = vunpack.c.l.b16 %v366
    %v502 = vunpack.c.l.b16 %v367
    %v503 = vunpack.c.l.b16 %v368
    %v504 = vunpack.c.l.b16 %v369
    %v505 = vunpack.c.l.b16 %v370
    %v506 = vunpack.c.l.b16 %v371
    %v507 = vunpack.c.l.b16 %v372
    %v508 = vunpack.c.l.b16 %v373
    %v509 = vunpack.c.l.b16 %v374
    %v510 = vunpack.c.l.b16 %v375
    %v511 = vunpack.c.l.b16 %v376
    %v512 = vunpack.c.l.b16 %v377
    %v513 = vunpack.c.l.b16 %v378
    %v514 = vunpack.c.l.b16 %v379
    %v515 = vunpack.c.l.b16 %v380
    %v516 = vunpack.c.l.b16 %v381
    %v517 = vunpack.c.l.b16 %v382
    %v518 = vunpack.c.l.b16 %v383
    %v519 = vunpack.c.l.b16 %v384
    %v520 = vunpack.c.l.b16 %v385
    %v521 = vunpack.c.l.b16 %v386
    %v522 = vunpack.c.l.b16 %v387
    %v523 = vunpack.c.l.b16 %v388
    %v524 = vunpack.c.l.b16 %v389
    %v525 = vunpack.c.l.b16 %v390
    %v526 = vunpack.c.l.b16 %v391
    %v527 = vunpack.c.l.b16 %v392
    %v528 = vunpack.c.l.b16 %v393
    %v529 = vunpack.c.l.b16 %v394
    %v530 = vunpack.c.l.b16 %v395
    %v531 = vunpack.c.l.b16 %v396
    %v532 = vunpack.c.l.b16 %v397
    %v533 = vunpack.c.l.b16 %v398
    %v534 = vunpack.c.l.b16 %v399
    %v535 = vunpack.c.l.b16 %v400
    %v536 = vunpack.c.l.b16 %v401
    %v537 = vunpack.c.l.b16 %v402
    %v538 = vunpack.c.l.b16 %v403
    %v539 = vunpack.c.l.b16 %v404
    %v540 = vpack.c.b16 %v477, %v476
    %v541 = vpack.c.b16 %v479, %v478
    %v542 = vpack.c.b16 %v481, %v480
    %v543 = vpack.c.b16 %v483, %v482
    %v544 = vpack.c.b16 %v485, %v484
    %v545 = vpack.c.b16 %v487, %v486
    %v546 = vpack.c.b16 %v489, %v488
    %v547 = vpack.c.b16 %v491, %v490
    %v548 = vpack.c.b16 %v493, %v492
    %v549 = vpack.c.b16 %v495, %v494
    %v550 = vpack.c.b16 %v497, %v496
    %v551 = vpack.c.b16 %v499, %v498
    %v552 = vpack.c.b16 %v501, %v500
    %v553 = vpack.c.b16 %v503, %v502
    %v554 = vpack.c.b16 %v505, %v504
    %v555 = vpack.c.b16 %v507, %v506
    %v556 = vpack.c.b16 %v509, %v508
    %v557 = vpack.c.b16 %v511, %v510
    %v558 = vpack.c.b16 %v513, %v512
    %v559 = vpack.c.b16 %v515, %v514
    %v560 = vpack.c.b16 %v517, %v516
    %v561 = vpack.c.b16 %v519, %v518
    %v562 = vpack.c.b16 %v521, %v520
    %v563 = vpack.c.b16 %v523, %v522
    %v564 = vpack.c.b16 %v525, %v524
    %v565 = vpack.c.b16 %v527, %v526
    %v566 = vpack.c.b16 %v529, %v528
    %v567 = vpack.c.b16 %v531, %v530
    %v568 = vpack.c.b16 %v533, %v532
    %v569 = vpack.c.b16 %v535, %v534
    %v570 = vpack.c.b16 %v537, %v536
    %v571 = vpack.c.b16 %v539, %v538
    %604 = vmatprep.subr.bf16.mxu0 0
    %605 = vmatpush1.bf16.msra.mxu0 %v547
    %606 = vmatprep.subr.bf16.mxu0 0
    %607 = vmatpush1.bf16.msra.mxu0 %v546
    %608 = vmatprep.subr.bf16.mxu0 0
    %609 = vmatpush1.bf16.msra.mxu0 %v545
    %610 = vmatprep.subr.bf16.mxu0 0
    %611 = vmatpush1.bf16.msra.mxu0 %v544
    %612 = vmatprep.subr.bf16.mxu0 0
    %613 = vmatpush1.bf16.msra.mxu0 %v543
    %614 = vmatprep.subr.bf16.mxu0 0
    %615 = vmatpush1.bf16.msra.mxu0 %v542
    %616 = vmatprep.subr.bf16.mxu0 0
    %617 = vmatpush1.bf16.msra.mxu0 %v541
    %618 = vmatprep.subr.bf16.mxu0 0
    %619 = vmatpush1.bf16.msra.mxu0 %v540
    %620 = vmatprep.subr.bf16.mxu0 0
    %621 = vmatpush2.bf16.msra.mxu0 %v555
    %622 = vmatprep.subr.bf16.mxu0 0
    %623 = vmatpush2.bf16.msra.mxu0 %v554
    %624 = vmatprep.subr.bf16.mxu0 0
    %625 = vmatpush2.bf16.msra.mxu0 %v553
    %626 = vmatprep.subr.bf16.mxu0 0
    %627 = vmatpush2.bf16.msra.mxu0 %v552
    %628 = vmatprep.subr.bf16.mxu0 0
    %629 = vmatpush2.bf16.msra.mxu0 %v551
    %630 = vmatprep.subr.bf16.mxu0 0
    %631 = vmatpush2.bf16.msra.mxu0 %v550
    %632 = vmatprep.subr.bf16.mxu0 0
    %633 = vmatpush2.bf16.msra.mxu0 %v549
    %634 = vmatprep.subr.bf16.mxu0 0
    %635 = vmatpush2.bf16.msra.mxu0 %v548
    %636 = vmatprep.mubr.bf16.mxu0 %v338
    %637 = vmatmul.mubr.bf16.gmra.mxu0 %v337
    %v638 = vpop.f32.mrf.mxu0
    %v639 = vadd.f32 %v410, %v638
    %v640 = vpop.f32.mrf.mxu0
    %v641 = vpop.f32.mrf.mxu0
    %v642 = vadd.f32 %v410, %v641
    %v643 = vpop.f32.mrf.mxu0
    %644 = vdwg.mxu0
    %645 = vmatprep.subr.bf16.mxu0 0
    %646 = vmatpush1.bf16.msra.mxu0 %v563
    %647 = vmatprep.subr.bf16.mxu0 0
    %648 = vmatpush1.bf16.msra.mxu0 %v562
    %649 = vmatprep.subr.bf16.mxu0 0
    %650 = vmatpush1.bf16.msra.mxu0 %v561
    %651 = vmatprep.subr.bf16.mxu0 0
    %652 = vmatpush1.bf16.msra.mxu0 %v560
    %653 = vmatprep.subr.bf16.mxu0 0
    %654 = vmatpush1.bf16.msra.mxu0 %v559
    %655 = vmatprep.subr.bf16.mxu0 0
    %656 = vmatpush1.bf16.msra.mxu0 %v558
    %657 = vmatprep.subr.bf16.mxu0 0
    %658 = vmatpush1.bf16.msra.mxu0 %v557
    %659 = vmatprep.subr.bf16.mxu0 0
    %660 = vmatpush1.bf16.msra.mxu0 %v556
    %661 = vmatprep.subr.bf16.mxu0 0
    %662 = vmatpush2.bf16.msra.mxu0 %v571
    %663 = vmatprep.subr.bf16.mxu0 0
    %664 = vmatpush2.bf16.msra.mxu0 %v570
    %665 = vmatprep.subr.bf16.mxu0 0
    %666 = vmatpush2.bf16.msra.mxu0 %v569
    %667 = vmatprep.subr.bf16.mxu0 0
    %668 = vmatpush2.bf16.msra.mxu0 %v568
    %669 = vmatprep.subr.bf16.mxu0 0
    %670 = vmatpush2.bf16.msra.mxu0 %v567
    %671 = vmatprep.subr.bf16.mxu0 0
    %672 = vmatpush2.bf16.msra.mxu0 %v566
    %673 = vmatprep.subr.bf16.mxu0 0
    %674 = vmatpush2.bf16.msra.mxu0 %v565
    %675 = vmatprep.subr.bf16.mxu0 0
    %676 = vmatpush2.bf16.msra.mxu0 %v564
    %677 = vmatprep.mubr.bf16.mxu0 %v340
    %678 = vmatmul.mubr.bf16.gmra.mxu0 %v339
    %v679 = vpop.f32.mrf.mxu0
    %v680 = vadd.f32 %v639, %v679
    %v681 = vpop.f32.mrf.mxu0
    %v682 = vpop.f32.mrf.mxu0
    %v683 = vadd.f32 %v642, %v682
    %v684 = vpop.f32.mrf.mxu0
    %685 = vdwg.mxu0
    %v686 = vmax.f32 %v680, 0.0
    %v687 = vmax.f32 %v683, 0.0
    %v688 = vld [vmem:[%s5] sm:$0x1]
    %v690 = vlaneseq
    %v691 = vshrl.u32 %v690, 7
    %v692 = vsub.s32 0, %v691
    %v693 = vrot.slane %v688, %v692
    %v695 = vmul.f32 %v686, %v693
    %v696 = vmul.f32 %v687, %v693
    %697 = vadd.xlane.f32.xlu0 %v695
    %v698 = vpop.xlane.xlu0 %697
    %699 = vadd.xlane.f32.xlu0 %v696
    %v700 = vpop.xlane.xlu0 %699
    %s701 = sld [smem:[#allocation2]]
    %v702 = vstv %s701
    %v703 = vadd.f32 %v698, %v702
    %v704 = vadd.f32 %v700, %v702
    %v705 = vxor.u32 %v703, 2147483648
    %v706 = vxor.u32 %v704, 2147483648
    %v707 = vmul.f32 %v705, 1.442695
    %v708 = vpow.pop %v707
    %v709 = vmul.f32 %v706, 1.442695
    %v710 = vpow.pop %v709
    %v711 = vadd.f32 %v708, 1.0
    %v712 = vadd.f32 %v710, 1.0
    %v713 = vrcp.pop %v711
    %v714 = vmul.f32 1.0, %v713
    %v715 = vrcp.pop %v712
    %v716 = vmul.f32 1.0, %v715
    %v719 = vlaneseq
    %v720 = vand.u32 %v719, 127
    %v721 = vlaneseq
    %v722 = vshrl.u32 %v721, 7
    %v723 = vsub.s32 %v720, %v722
    %v724 = vrot.slane %v714, %v723
    %v725 = vadd.s32 %v720, 4294967288
    %v726 = vlaneseq
    %v727 = vshrl.u32 %v726, 7
    %v728 = vsub.s32 %v725, %v727
    %v729 = vrot.slane %v716, %v728
    %vm730 = vcmask 130112
    %v731 = vsel %vm730, %v729, %v724
    %vm733 = vcmask 122880
    %734 = vst.msk [vmem:[#allocation9] sm:$0x1] %vm733, %v731
    // Predicated region
    $region42: #{tpu_custom_call.1} parent=1 // pred_check
      _
    $region43: #{tpu_custom_call.1} parent=1 // pred_check_branch
      %736 = sbr.rel (0) target = $region45
    $region44: #{tpu_custom_call.1} parent=1 // pred_region
      %s738 = ssub.s32 16, 16
      %739 = vsyncadd [#allocation5], %s738
      %s741 = sshll.u32 [#allocation9], 4
      %s742 = int_to_ptr.vmem [resolvable:$true] %s741
      %744 = dma.vmem_to_hbm [thread:$0]  %s742, 16, %s7, [#allocation5]
    $region45: #{tpu_custom_call.1} parent=1 // pred_fallthru
      _
    // Predicated region
    $region46: #{tpu_custom_call.1} parent=1 // pred_check
      _
    $region47: #{tpu_custom_call.1} parent=1 // pred_check_branch
      %746 = sbr.rel (0) target = $region49
    $region48: #{tpu_custom_call.1} parent=1 // pred_region
      %747 = dma.done [#allocation5], 16
    $region49: #{tpu_custom_call.1} parent=1 // pred_fallthru
      _
    %748 = vsyncpa [#allocation4], 1
    %749 = vsyncpa [#allocation7], 1
    %750 = vsyncpa [#allocation5], 1

</llo_original>
